<compile_context>
chip_gen: v7x
topology: tpu7x:2x2x1
jax: 0.10.0
libtpu: 0.0.40
codegen_flags: <defaults>
</compile_context>

<pallas_src>
import functools

import jax
import jax.numpy as jnp
from jax import lax
from jax.experimental import pallas as pl
from jax.experimental.pallas import tpu as pltpu


def _round_up(x, m):
    return (x + m - 1) // m * m


def _vmem_capacity_bytes():
    """Physical VMEM of the local TPU generation (fallback: conservative 64 MiB)."""
    try:
        return int(pltpu.get_tpu_info().vmem_capacity_bytes)
    except Exception:  # not queryable -> assume smallest (v7x per-TC)
        return 64 * 1024 * 1024


def _choose_tile_m(m_img, cin, cout, budget_bytes):
    """Largest TM (multiple of 128, cap 32768) whose tile working set fits half the budget."""
    # f32 bytes per lane column: X in (double-buffered) + Y out (double-buffered).
    per_col = 4 * (2 * cin + 2 * cout)
    tm = (budget_bytes // 2 // per_col) // 128 * 128
    tm = max(128, min(32768, tm))
    return min(tm, _round_up(m_img, 128))


def shortcut_kernel(x_ref, w_ref, o_ref, s_acc, ss_acc, wn_ref, b_ref, *maybe_cache,
                    m_true, eps, cache_x):
    # x_ref: (Cin, TM)   w_ref: (Cout, Cin)   o_ref: (Cout, TM)
    # s_acc/ss_acc/b_ref: (Cout, 1) f32       wn_ref: (Cout, Cin) f32
    # maybe_cache: optional (N*n_tiles, Cin, TM) VMEM X cache (single-X-read path)
    p = pl.program_id(0)           # phase: 0 = stats, 1 = normalize + write
    n = pl.program_id(1)           # batch index
    i = pl.program_id(2)           # M-tile index
    nb = pl.num_programs(1)
    nt = pl.num_programs(2)

    @pl.when(p == 0)
    def _stats_phase():
        @pl.when((n == 0) & (i == 0))
        def _init():
            s_acc[...] = jnp.zeros_like(s_acc)
            ss_acc[...] = jnp.zeros_like(ss_acc)

        x = x_ref[...]
        if cache_x:
            # Persist this tile so phase 1 never re-reads X from HBM.
            maybe_cache[0][n * nt + i] = x

        # 1x1 conv tile on the MXU (f32 accumulate).
        y = jnp.dot(w_ref[...], x, preferred_element_type=jnp.float32)
        # Per-tile cross-lane reduce (XLU slot) into tiny (Cout, 1) accumulators:
        # no full-width accumulator stores (VPU vst slot was binding on v5e).
        s_acc[...] += jnp.sum(y, axis=1, keepdims=True)
        ss_acc[...] += jnp.sum(y * y, axis=1, keepdims=True)

        @pl.when((n == nb - 1) & (i == nt - 1))
        def _finalize():
            inv_m = 1.0 / m_true
            mean = s_acc[...] * inv_m                       # (Cout, 1)
            var = ss_acc[...] * inv_m - mean * mean         # biased variance
            istd = lax.rsqrt(var + eps)
            # Fold normalization into the weights: phase 1 is a matmul + add.
            wn_ref[...] = w_ref[...] * istd                 # (Cout, Cin)
            b_ref[...] = -mean * istd                       # (Cout, 1)

    @pl.when(p == 1)
    def _normalize_phase():
        if cache_x:
            x = maybe_cache[0][n * nt + i]                  # VMEM, no HBM re-read
        else:
            x = x_ref[...]
        y = jnp.dot(wn_ref[...], x, preferred_element_type=jnp.float32)
        o_ref[...] = (y + b_ref[...]).astype(o_ref.dtype)


def shortcut_layer(x_nchw, conv_weight, stride, eps=1e-5):
    """x_nchw: (N, Cin, H, W) float32; conv_weight: (Cout, Cin, 1, 1)."""
    N, Cin, H, W = x_nchw.shape
    Cout = conv_weight.shape[0]

    # A strided 1x1 conv only subsamples spatially; fold the stride by slicing.
    xs = x_nchw[:, :, ::stride, ::stride]                     # (N, Cin, Ho, Wo)
    Ho, Wo = xs.shape[2], xs.shape[3]
    m_img = Ho * Wo
    m_total = N * m_img

    # Channels-on-sublanes / pixels-on-lanes, batch kept as a grid axis (no transpose).
    x3 = xs.reshape(N, Cin, m_img)                            # (N, Cin, M_img)
    wt = conv_weight.reshape(Cout, Cin)                       # (Cout, Cin)

    # Generation-aware VMEM budget (v5e/v6e: 128 MiB, v7x: 64 MiB physical).
    vmem_cap = _vmem_capacity_bytes()
    vmem_limit = int(min(vmem_cap * 3 // 4, 100 * 1024 * 1024))
    budget = vmem_limit - 4 * 1024 * 1024                     # compiler headroom

    TM = _choose_tile_m(m_img, Cin, Cout, budget)
    Mp = _round_up(m_img, TM)
    if Mp != m_img:
        # Zero columns give y == 0 -> contribute nothing to the sums; mean/var use true M.
        x3 = jnp.pad(x3, ((0, 0), (0, 0), (0, Mp - m_img)))
    n_tiles = Mp // TM

    # Single-X-read fast path: cache all X tiles in VMEM if they fit alongside the
    # per-tile working set -> HBM traffic drops from 2X+Y to X+Y.
    tile_ws = TM * 4 * (2 * Cin + 2 * Cout) + (1 << 20)
    cache_bytes = N * n_tiles * Cin * TM * 4
    cache_x = (cache_bytes + tile_ws) <= budget

    kernel = functools.partial(
        shortcut_kernel, m_true=float(m_total), eps=float(eps), cache_x=cache_x)

    if cache_x:
        # Phase 0: walk (n, i). Phase 1: pin to the last phase-0 block so the block
        # index never changes -> Pallas issues no input DMA at all in phase 1.
        x_map = lambda p, n, i: (n * (1 - p) + (N - 1) * p, 0,
                                 i * (1 - p) + (n_tiles - 1) * p)
    else:
        x_map = lambda p, n, i: (n, 0, i)

    scratch = [
        pltpu.VMEM((Cout, 1), jnp.float32),    # per-channel sum
        pltpu.VMEM((Cout, 1), jnp.float32),    # per-channel sum of squares
        pltpu.VMEM((Cout, Cin), jnp.float32),  # folded (normalized) weights
        pltpu.VMEM((Cout, 1), jnp.float32),    # folded bias (-mean * inv_std)
    ]
    if cache_x:
        scratch.append(pltpu.VMEM((N * n_tiles, Cin, TM), x3.dtype))

    out3 = pl.pallas_call(
        kernel,
        out_shape=jax.ShapeDtypeStruct((N, Cout, Mp), x_nchw.dtype),
        grid=(2, N, n_tiles),                                  # (phase, batch, M tiles)
        in_specs=[
            pl.BlockSpec((None, Cin, TM), x_map),              # X tile (batch squeezed)
            pl.BlockSpec((Cout, Cin), lambda p, n, i: (0, 0)), # W resident
        ],
        # Phase 0 -> block (0,0,0): never written, block index constant => stays
        # resident and is NOT written back; phase 1 -> block (n,0,i), fully
        # overwritten before its index changes (dense full-lane stores).
        out_specs=pl.BlockSpec((None, Cout, TM), lambda p, n, i: (n * p, 0, i * p)),
        scratch_shapes=scratch,
        compiler_params=pltpu.CompilerParams(
            # All axes carry cross-step state (stats accumulators / phase ordering).
            dimension_semantics=("arbitrary", "arbitrary", "arbitrary"),
            vmem_limit_bytes=vmem_limit,
        ),
    )(x3, wt)

    # Drop the lane padding and restore NCHW (no transpose needed).
    return out3[:, :, :m_img].reshape(N, Cout, Ho, Wo)


def _reference(x_nchw, conv_weight, stride):
    """Pure-JAX reference: strided 1x1 conv + batch-stat BN (affine=False)."""
    y = lax.conv_general_dilated(
        x_nchw, conv_weight, window_strides=(stride, stride), padding="VALID",
        dimension_numbers=("NCHW", "OIHW", "NCHW"))
    mean = jnp.mean(y, axis=(0, 2, 3), keepdims=True)
    var = jnp.mean((y - mean) ** 2, axis=(0, 2, 3), keepdims=True)
    return (y - mean) * lax.rsqrt(var + 1e-5)


if __name__ == "__main__":
    key = jax.random.PRNGKey(0)
    k_x, k_w = jax.random.split(key)

    N, Cin, H, W = 2, 4, 16, 16
    Cout, stride = 8, 2

    x = jax.random.normal(k_x, (N, Cin, H, W), dtype=jnp.float32)
    # Deterministic Kaiming-style init for the 1x1 conv weight (bias=False).
    fan_in = Cin * 1 * 1
    w = jax.random.normal(k_w, (Cout, Cin, 1, 1), dtype=jnp.float32) * (2.0 / fan_in) ** 0.5

    out = shortcut_layer(x, w, stride)
    out = jax.block_until_ready(out)

    ref = _reference(x, w, stride)
    assert out.shape == (N, Cout, H // stride, W // stride)
    assert jnp.allclose(out, ref, atol=1e-4, rtol=1e-4)

    print("KERNEL_OK")
</pallas_src>

<mosaic_0001>
module attributes {stable_mosaic.version = 11 : i64} {
  func.func @shortcut_kernel(%arg0: i32, %arg1: i32, %arg2: i32, %arg3: memref<1x4x128xf32, #tpu.memory_space<vmem>>, %arg4: memref<8x4xf32, #tpu.memory_space<vmem>>, %arg5: memref<1x8x128xf32, #tpu.memory_space<vmem>>, %arg6: memref<8x1xf32, #tpu.memory_space<vmem>>, %arg7: memref<8x1xf32, #tpu.memory_space<vmem>>, %arg8: memref<8x4xf32, #tpu.memory_space<vmem>>, %arg9: memref<8x1xf32, #tpu.memory_space<vmem>>, %arg10: memref<2x4x128xf32, #tpu.memory_space<vmem>>) attributes {dimension_semantics = [#tpu.dimension_semantics<arbitrary>, #tpu.dimension_semantics<arbitrary>, #tpu.dimension_semantics<arbitrary>], iteration_bounds = array<i64: 2, 2, 1>, scalar_prefetch = 0 : i64, scratch_operands = 5 : i64, tpu.core_type = #tpu.core_type<tc>, window_params = [{transform_indices = @transform_0, window_bounds = array<i64: 1, 4, 128>}, {pipeline_mode = #tpu.pipeline_mode<synchronous>, transform_indices = @transform_1, window_bounds = array<i64: 8, 4>}, {transform_indices = @transform_2, window_bounds = array<i64: 1, 8, 128>}]} {
    %c0_i32 = arith.constant 0 : i32
    %0 = arith.cmpi eq, %arg0, %c0_i32 : i32
    %1 = arith.extui %0 : i1 to i32
    %c0_i32_0 = arith.constant 0 : i32
    %2 = arith.cmpi ne, %1, %c0_i32_0 : i32
    scf.if %2 {
      %c0_i32_2 = arith.constant 0 : i32
      %6 = arith.cmpi eq, %arg1, %c0_i32_2 : i32
      %c0_i32_3 = arith.constant 0 : i32
      %7 = arith.cmpi eq, %arg2, %c0_i32_3 : i32
      %8 = arith.andi %6, %7 : i1
      %9 = arith.extui %8 : i1 to i32
      %c0_i32_4 = arith.constant 0 : i32
      %10 = arith.cmpi ne, %9, %c0_i32_4 : i32
      scf.if %10 {
        %cst_25 = arith.constant 0.000000e+00 : f32
        %37 = vector.broadcast %cst_25 : f32 to vector<8x1xf32>
        %c0_26 = arith.constant 0 : index
        %c0_27 = arith.constant 0 : index
        %38 = vector.load %arg6[%c0_26, %c0_27] : memref<8x1xf32, #tpu.memory_space<vmem>>, vector<8x1xf32>
        tpu.vector_store %arg6[%c0_26, %c0_27], %37 {strides = array<i32>} : memref<8x1xf32, #tpu.memory_space<vmem>>, vector<8x1xf32>,
        %cst_28 = arith.constant 0.000000e+00 : f32
        %39 = vector.broadcast %cst_28 : f32 to vector<8x1xf32>
        %c0_29 = arith.constant 0 : index
        %c0_30 = arith.constant 0 : index
        %40 = vector.load %arg7[%c0_29, %c0_30] : memref<8x1xf32, #tpu.memory_space<vmem>>, vector<8x1xf32>
        tpu.vector_store %arg7[%c0_29, %c0_30], %39 {strides = array<i32>} : memref<8x1xf32, #tpu.memory_space<vmem>>, vector<8x1xf32>,
      } else {
      }
      %c0 = arith.constant 0 : index
      %c0_5 = arith.constant 0 : index
      %c0_6 = arith.constant 0 : index
      %11 = vector.load %arg3[%c0, %c0_5, %c0_6] : memref<1x4x128xf32, #tpu.memory_space<vmem>>, vector<1x4x128xf32>
      %12 = vector.shape_cast %11 : vector<1x4x128xf32> to vector<4x128xf32>
      %c1_i32_7 = arith.constant 1 : i32
      %13 = arith.muli %arg1, %c1_i32_7 : i32
      %14 = arith.addi %13, %arg2 : i32
      %15 = arith.index_cast %14 : i32 to index
      %c0_8 = arith.constant 0 : index
      %c0_9 = arith.constant 0 : index
      %16 = vector.load %arg10[%15, %c0_8, %c0_9] : memref<2x4x128xf32, #tpu.memory_space<vmem>>, vector<1x4x128xf32>
      %17 = vector.shape_cast %16 : vector<1x4x128xf32> to vector<4x128xf32>
      %18 = vector.shape_cast %12 : vector<4x128xf32> to vector<1x4x128xf32>
      tpu.vector_store %arg10[%15, %c0_8, %c0_9], %18 {strides = array<i32>} : memref<2x4x128xf32, #tpu.memory_space<vmem>>, vector<1x4x128xf32>,
      %c0_10 = arith.constant 0 : index
      %c0_11 = arith.constant 0 : index
      %19 = vector.load %arg4[%c0_10, %c0_11] : memref<8x4xf32, #tpu.memory_space<vmem>>, vector<8x4xf32>
      %cst = arith.constant dense<0.000000e+00> : vector<8x128xf32>
      %20 = tpu.matmul %19, %12, %cst {dimension_numbers = #tpu.dot_dimension_numbers<[1], [0], [0], [1], [0, 0, 1, 1], [], []>} : vector<8x4xf32>, vector<4x128xf32>, vector<8x128xf32> -> vector<8x128xf32>
      %c0_12 = arith.constant 0 : index
      %c0_13 = arith.constant 0 : index
      %21 = vector.load %arg6[%c0_12, %c0_13] : memref<8x1xf32, #tpu.memory_space<vmem>>, vector<8x1xf32>
      %cst_14 = arith.constant dense<0.000000e+00> : vector<8xf32>
      %22 = vector.multi_reduction <add>, %20, %cst_14 [1] : vector<8x128xf32> to vector<8xf32>
      %23 = vector.shape_cast %22 : vector<8xf32> to vector<8x1xf32>
      %24 = arith.addf %21, %23 : vector<8x1xf32>
      %c0_15 = arith.constant 0 : index
      %c0_16 = arith.constant 0 : index
      %25 = vector.load %arg6[%c0_15, %c0_16] : memref<8x1xf32, #tpu.memory_space<vmem>>, vector<8x1xf32>
      tpu.vector_store %arg6[%c0_15, %c0_16], %24 {strides = array<i32>} : memref<8x1xf32, #tpu.memory_space<vmem>>, vector<8x1xf32>,
      %c0_17 = arith.constant 0 : index
      %c0_18 = arith.constant 0 : index
      %26 = vector.load %arg7[%c0_17, %c0_18] : memref<8x1xf32, #tpu.memory_space<vmem>>, vector<8x1xf32>
      %27 = arith.mulf %20, %20 : vector<8x128xf32>
      %cst_19 = arith.constant dense<0.000000e+00> : vector<8xf32>
      %28 = vector.multi_reduction <add>, %27, %cst_19 [1] : vector<8x128xf32> to vector<8xf32>
      %29 = vector.shape_cast %28 : vector<8xf32> to vector<8x1xf32>
      %30 = arith.addf %26, %29 : vector<8x1xf32>
      %c0_20 = arith.constant 0 : index
      %c0_21 = arith.constant 0 : index
      %31 = vector.load %arg7[%c0_20, %c0_21] : memref<8x1xf32, #tpu.memory_space<vmem>>, vector<8x1xf32>
      tpu.vector_store %arg7[%c0_20, %c0_21], %30 {strides = array<i32>} : memref<8x1xf32, #tpu.memory_space<vmem>>, vector<8x1xf32>,
      %c1_i32_22 = arith.constant 1 : i32
      %32 = arith.cmpi eq, %arg1, %c1_i32_22 : i32
      %c0_i32_23 = arith.constant 0 : i32
      %33 = arith.cmpi eq, %arg2, %c0_i32_23 : i32
      %34 = arith.andi %32, %33 : i1
      %35 = arith.extui %34 : i1 to i32
      %c0_i32_24 = arith.constant 0 : i32
      %36 = arith.cmpi ne, %35, %c0_i32_24 : i32
      scf.if %36 {
        %c0_25 = arith.constant 0 : index
        %c0_26 = arith.constant 0 : index
        %37 = vector.load %arg6[%c0_25, %c0_26] : memref<8x1xf32, #tpu.memory_space<vmem>>, vector<8x1xf32>
        %cst_27 = arith.constant 7.812500e-03 : f32
        %38 = vector.broadcast %cst_27 : f32 to vector<8x1xf32>
        %39 = arith.mulf %37, %38 : vector<8x1xf32>
        %c0_28 = arith.constant 0 : index
        %c0_29 = arith.constant 0 : index
        %40 = vector.load %arg7[%c0_28, %c0_29] : memref<8x1xf32, #tpu.memory_space<vmem>>, vector<8x1xf32>
        %cst_30 = arith.constant 7.812500e-03 : f32
        %41 = vector.broadcast %cst_30 : f32 to vector<8x1xf32>
        %42 = arith.mulf %40, %41 : vector<8x1xf32>
        %43 = arith.mulf %39, %39 : vector<8x1xf32>
        %44 = arith.subf %42, %43 : vector<8x1xf32>
        %cst_31 = arith.constant 9.99999974E-6 : f32
        %45 = vector.broadcast %cst_31 : f32 to vector<8x1xf32>
        %46 = arith.addf %44, %45 : vector<8x1xf32>
        %47 = math.rsqrt %46 : vector<8x1xf32>
        %c0_32 = arith.constant 0 : index
        %c0_33 = arith.constant 0 : index
        %48 = vector.load %arg4[%c0_32, %c0_33] : memref<8x4xf32, #tpu.memory_space<vmem>>, vector<8x4xf32>
        %49 = vector.broadcast %47 : vector<8x1xf32> to vector<8x4xf32>
        %50 = arith.mulf %48, %49 : vector<8x4xf32>
        %c0_34 = arith.constant 0 : index
        %c0_35 = arith.constant 0 : index
        %51 = vector.load %arg8[%c0_34, %c0_35] : memref<8x4xf32, #tpu.memory_space<vmem>>, vector<8x4xf32>
        tpu.vector_store %arg8[%c0_34, %c0_35], %50 {strides = array<i32>} : memref<8x4xf32, #tpu.memory_space<vmem>>, vector<8x4xf32>,
        %cst_36 = arith.constant 0.000000e+00 : f32
        %52 = vector.broadcast %cst_36 : f32 to vector<8x1xf32>
        %53 = arith.subf %52, %39 : vector<8x1xf32>
        %54 = arith.mulf %53, %47 : vector<8x1xf32>
        %c0_37 = arith.constant 0 : index
        %c0_38 = arith.constant 0 : index
        %55 = vector.load %arg9[%c0_37, %c0_38] : memref<8x1xf32, #tpu.memory_space<vmem>>, vector<8x1xf32>
        tpu.vector_store %arg9[%c0_37, %c0_38], %54 {strides = array<i32>} : memref<8x1xf32, #tpu.memory_space<vmem>>, vector<8x1xf32>,
      } else {
      }
    } else {
    }
    %c1_i32 = arith.constant 1 : i32
    %3 = arith.cmpi eq, %arg0, %c1_i32 : i32
    %4 = arith.extui %3 : i1 to i32
    %c0_i32_1 = arith.constant 0 : i32
    %5 = arith.cmpi ne, %4, %c0_i32_1 : i32
    scf.if %5 {
      %c1_i32_2 = arith.constant 1 : i32
      %6 = arith.muli %arg1, %c1_i32_2 : i32
      %7 = arith.addi %6, %arg2 : i32
      %8 = arith.index_cast %7 : i32 to index
      %c0 = arith.constant 0 : index
      %c0_3 = arith.constant 0 : index
      %9 = vector.load %arg10[%8, %c0, %c0_3] : memref<2x4x128xf32, #tpu.memory_space<vmem>>, vector<1x4x128xf32>
      %10 = vector.shape_cast %9 : vector<1x4x128xf32> to vector<4x128xf32>
      %c0_4 = arith.constant 0 : index
      %c0_5 = arith.constant 0 : index
      %11 = vector.load %arg8[%c0_4, %c0_5] : memref<8x4xf32, #tpu.memory_space<vmem>>, vector<8x4xf32>
      %cst = arith.constant dense<0.000000e+00> : vector<8x128xf32>
      %12 = tpu.matmul %11, %10, %cst {dimension_numbers = #tpu.dot_dimension_numbers<[1], [0], [0], [1], [0, 0, 1, 1], [], []>} : vector<8x4xf32>, vector<4x128xf32>, vector<8x128xf32> -> vector<8x128xf32>
      %c0_6 = arith.constant 0 : index
      %c0_7 = arith.constant 0 : index
      %13 = vector.load %arg9[%c0_6, %c0_7] : memref<8x1xf32, #tpu.memory_space<vmem>>, vector<8x1xf32>
      %14 = vector.broadcast %13 : vector<8x1xf32> to vector<8x128xf32>
      %15 = arith.addf %12, %14 : vector<8x128xf32>
      %c0_8 = arith.constant 0 : index
      %c0_9 = arith.constant 0 : index
      %c0_10 = arith.constant 0 : index
      %16 = vector.load %arg5[%c0_8, %c0_9, %c0_10] : memref<1x8x128xf32, #tpu.memory_space<vmem>>, vector<1x8x128xf32>
      %17 = vector.shape_cast %16 : vector<1x8x128xf32> to vector<8x128xf32>
      %18 = vector.shape_cast %15 : vector<8x128xf32> to vector<1x8x128xf32>
      tpu.vector_store %arg5[%c0_8, %c0_9, %c0_10], %18 {strides = array<i32>} : memref<1x8x128xf32, #tpu.memory_space<vmem>>, vector<1x8x128xf32>,
    } else {
    }
    return
  }
  func.func @transform_0(%arg0: i32, %arg1: i32, %arg2: i32) -> (i32, i32, i32) {
    %c1_i32 = arith.constant 1 : i32
    %0 = arith.subi %c1_i32, %arg0 : i32
    %1 = arith.muli %arg1, %0 : i32
    %c1_i32_0 = arith.constant 1 : i32
    %2 = arith.muli %c1_i32_0, %arg0 : i32
    %3 = arith.addi %1, %2 : i32
    %c1_i32_1 = arith.constant 1 : i32
    %4 = arith.subi %c1_i32_1, %arg0 : i32
    %5 = arith.muli %arg2, %4 : i32
    %c0_i32 = arith.constant 0 : i32
    %6 = arith.muli %c0_i32, %arg0 : i32
    %7 = arith.addi %5, %6 : i32
    %c0_i32_2 = arith.constant 0 : i32
    %c0_i32_3 = arith.constant 0 : i32
    return %3, %c0_i32_2, %7 : i32, i32, i32
  }
  func.func @transform_1(%arg0: i32, %arg1: i32, %arg2: i32) -> (i32, i32) {
    %c0_i32 = arith.constant 0 : i32
    %c0_i32_0 = arith.constant 0 : i32
    %c0_i32_1 = arith.constant 0 : i32
    return %c0_i32, %c0_i32_0 : i32, i32
  }
  func.func @transform_2(%arg0: i32, %arg1: i32, %arg2: i32) -> (i32, i32, i32) {
    %0 = arith.muli %arg1, %arg0 : i32
    %1 = arith.muli %arg2, %arg0 : i32
    %c0_i32 = arith.constant 0 : i32
    %c0_i32_0 = arith.constant 0 : i32
    return %0, %c0_i32, %1 : i32, i32, i32
  }
}

</mosaic_0001>

<llo_original>
// kernel: tpu_custom_call.1
$region0: #{tpu_custom_call.1}
  #allocation0 [shape = 'u32[]', space=smem, size = 0x4, offset = 0x4, fixed_abs, tag = 'smem constant byte address 0x4 - core index']
  #allocation1 [shape = 'u32[144,128]{1,0:T(1,128)}', space=vmem, size = 0x12000, scoped, tag = 'internal scratch']
  #allocation2 [shape = 'f32[8,1]{1,0:T(8,128)}', space=vmem, size = 0x1000, scoped, tag = 'scratch operand']
  #allocation3 [shape = 'f32[8,1]{1,0:T(8,128)}', space=vmem, size = 0x1000, scoped, tag = 'scratch operand']
  #allocation4 [shape = 'f32[8,4]{1,0:T(8,128)}', space=vmem, size = 0x1000, scoped, tag = 'scratch operand']
  #allocation5 [shape = 'f32[8,1]{1,0:T(8,128)}', space=vmem, size = 0x1000, scoped, tag = 'scratch operand']
  #allocation6 [shape = 'f32[2,4,128]{2,1,0:T(4,128)}', space=vmem, size = 0x1000, scoped, tag = 'scratch operand']
  %s0 = inlined_call_operand.vmem [shape: f32[2,4,128], index: 0, kind: input, shape index: {}]
  %s1 = inlined_call_operand.vmem [shape: f32[8,4], index: 1, kind: input, shape index: {}]
  %s2 = inlined_call_operand.hbm [shape: f32[2,8,128], index: 2, kind: output, shape index: {}]
  %s3 = sld [smem:[#allocation0]]
  $region57: #{tpu_custom_call.1} parent=0
    _
  %s5 = ssub.s32 1, %s3
  %s6 = scalar_select 0, %s5, %s3
  $region1: #{tpu_custom_call.1} parent=0
    #allocation7 [shape = 'u8[8192]{0}', space=vmem, size = 0x2000, scoped, tag = 'output window, operand 0']
    #allocation8 [shape = 's32[2]{0}', space=sflag, size = 0x8, scoped, tag = 'scoped memory for tpu_custom_call.1']
    %7 = vsyncpa [#allocation8], 0
    %s8 = scalar_lea.sflag [#allocation8], 1
    %9 = vsyncpa %s8, 0
    loop: start=0, step=1, limit=6
    $region2: #{tpu_custom_call.1} parent=1 // loop_pre_header
      _
    $region3: #{tpu_custom_call.1} parent=1 // loop_header
      %s11 = sphi 0, %s15
      %p12 = scmp.ge.s32.totalorder %s11, 6
      %s18 = sphi 0, %s37
      %s19 = sphi 0, %s33
      %s20 = sphi 0, %s29
      %s21 = sphi 0, %s18
      %s22 = sphi 0, %s19
      %s23 = sphi 0, %s20
      %s24 = sphi 0, %s21
      %s25 = sphi 0, %s22
      %s26 = sphi 0, %s23
      %s50 = sphi 0, %s52
      %s53 = sphi 0, %s50
      %s54 = sphi 0, %s53
      %s70 = sphi 0, %s54
      %s74 = sphi 0, %s74
      %s76 = sphi 0, %s74
      %s77 = sphi 0, %s76
      %s91 = sphi 0, %s77
      %s103 = sphi 0, %s105
      %s106 = sphi 0, %s103
      %s107 = sphi 0, %s106
      %s123 = sphi 0, %s107
    $region4: #{tpu_custom_call.1} parent=1 // loop_header_branch
      %14 = sbr.rel (%p12) target = $region8
    $region5: #{tpu_custom_call.1} parent=1 // loop_body
      %s16 = ssub.s32 %s11, 1
      %s17 = ssub.s32 %s11, 2
      %s27 = sadd.s32 1, %s20
      %p28 = scmp.ge.s32.totalorder %s27, 1
      %s29 = scalar_select %p28, 0, %s27
      %s30 = sadd.s32 1, %s19
      %s31 = scalar_select %p28, %s30, %s19
      %p32 = scmp.ge.s32.totalorder %s31, 2
      %s33 = scalar_select %p32, 0, %s31
      %s34 = sadd.s32 1, %s18
      %s35 = scalar_select %p32, %s34, %s18
      %p36 = scmp.ge.s32.totalorder %s35, 2
      %s37 = scalar_select %p36, 0, %s35
      %s38 = ssub.s32 1, %s18
      %s39 = smul.u32 %s19, %s38
      %s40 = sadd.s32 %s39, %s18
      %s41 = smul.u32 %s20, %s38
      %s42 = ssub.s32 1, %s37
      %s43 = smul.u32 %s33, %s42
      %s44 = sadd.s32 %s43, %s37
      %s45 = smul.u32 %s29, %s42
      %s46 = ssub.s32 %s40, %s44
      %s47 = ssub.s32 %s41, %s45
      %s48 = sor.u32 %s46, %s47
      %p49 = scmp.eq.s32.totalorder %s48, 0
      %s51 = sadd.s32 %s50, 1
      %s52 = scalar_select %p49, %s50, %s51
      %p55 = pneg %p49
      %p56 = scmp.eq.s32.totalorder %s11, 3
      %p57 = por %p55, %p56
      %p58 = scmp.ne.s32.totalorder %s50, %s53
      %p59 = scmp.eq.s32.totalorder %s11, 0
      %p60 = por %p58, %p59
      %p61 = scmp.ne.s32.totalorder %s50, %s53
      %p62 = scmp.eq.s32.totalorder %s16, 3
      %p63 = por %p61, %p62
      %p64 = scmp.ne.s32.totalorder %s53, %s54
      %p65 = scmp.eq.s32.totalorder %s16, 0
      %p66 = por %p64, %p65
      %p67 = scmp.ne.s32.totalorder %s53, %s54
      %p68 = scmp.eq.s32.totalorder %s17, 3
      %p69 = por %p67, %p68
      %p71 = scmp.ne.s32.totalorder %s54, %s70
      %p72 = scmp.eq.s32.totalorder %s17, 0
      %p73 = por %p71, %p72
      %s75 = sadd.s32 %s74, 1
      %p78 = scmp.eq.s32.totalorder %s11, 3
      %p79 = scmp.ne.s32.totalorder %s74, %s76
      %p80 = scmp.eq.s32.totalorder %s11, 0
      %p81 = por %p79, %p80
      %p82 = scmp.ne.s32.totalorder %s74, %s76
      %p83 = scmp.eq.s32.totalorder %s16, 3
      %p84 = por %p82, %p83
      %p85 = scmp.ne.s32.totalorder %s76, %s77
      %p86 = scmp.eq.s32.totalorder %s16, 0
      %p87 = por %p85, %p86
      %p88 = scmp.ne.s32.totalorder %s76, %s77
      %p89 = scmp.eq.s32.totalorder %s17, 3
      %p90 = por %p88, %p89
      %p92 = scmp.ne.s32.totalorder %s77, %s91
      %p93 = scmp.eq.s32.totalorder %s17, 0
      %p94 = por %p92, %p93
      %s95 = smul.u32 %s19, %s18
      %s96 = smul.u32 %s20, %s18
      %s97 = smul.u32 %s33, %s37
      %s98 = smul.u32 %s29, %s37
      %s99 = ssub.s32 %s95, %s97
      %s100 = ssub.s32 %s96, %s98
      %s101 = sor.u32 %s99, %s100
      %p102 = scmp.eq.s32.totalorder %s101, 0
      %s104 = sadd.s32 %s103, 1
      %s105 = scalar_select %p102, %s103, %s104
      %p108 = pneg %p102
      %p109 = scmp.eq.s32.totalorder %s11, 3
      %p110 = por %p108, %p109
      %p111 = scmp.ne.s32.totalorder %s103, %s106
      %p112 = scmp.eq.s32.totalorder %s11, 0
      %p113 = por %p111, %p112
      %p114 = scmp.ne.s32.totalorder %s103, %s106
      %p115 = scmp.eq.s32.totalorder %s16, 3
      %p116 = por %p114, %p115
      %p117 = scmp.ne.s32.totalorder %s106, %s107
      %p118 = scmp.eq.s32.totalorder %s16, 0
      %p119 = por %p117, %p118
      %p120 = scmp.ne.s32.totalorder %s106, %s107
      %p121 = scmp.eq.s32.totalorder %s17, 3
      %p122 = por %p120, %p121
      %p124 = scmp.ne.s32.totalorder %s107, %s123
      %p125 = scmp.eq.s32.totalorder %s17, 0
      %p126 = por %p124, %p125
      %p127 = scmp.le.s32.totalorder 1, %s11
      %p128 = scmp.lt.s32.totalorder %s11, 5
      %p129 = pnand %p127, %p128
      %p130 = pneg %p129
      // Predicated region
      $region9: #{tpu_custom_call.1} parent=5 // pred_check
        _
      $region10: #{tpu_custom_call.1} parent=5 // pred_check_branch
        %132 = sbr.rel (%p129) target = $region12
      $region11: #{tpu_custom_call.1} parent=5 // pred_region
        %s133 = ssub.s32 %s11, 1
        // Predicated region
        $region13: #{tpu_custom_call.1} parent=11 // pred_check
          %p134 = pneg %p87
        $region14: #{tpu_custom_call.1} parent=11 // pred_check_branch
          %136 = sbr.rel (%p134) target = $region16
        $region15: #{tpu_custom_call.1} parent=11 // pred_region
          _
        $region16: #{tpu_custom_call.1} parent=11 // pred_fallthru
          _
      $region12: #{tpu_custom_call.1} parent=5 // pred_fallthru
        _
      %p137 = scmp.lt.s32.totalorder %s11, 4
      // Predicated region
      $region17: #{tpu_custom_call.1} parent=5 // pred_check
        %p138 = pneg %p137
      $region18: #{tpu_custom_call.1} parent=5 // pred_check_branch
        %140 = sbr.rel (%p138) target = $region20
      $region19: #{tpu_custom_call.1} parent=5 // pred_region
        // Predicated region
        $region21: #{tpu_custom_call.1} parent=19 // pred_check
          %p141 = pneg %p60
        $region22: #{tpu_custom_call.1} parent=19 // pred_check_branch
          %143 = sbr.rel (%p141) target = $region24
        $region23: #{tpu_custom_call.1} parent=19 // pred_region
          %s144 = ssub.s32 1, %s18
          %s145 = smul.u32 %s19, %s144
          %s146 = sadd.s32 %s145, %s18
          %s147 = smul.u32 %s20, %s144
          %p148 = scmp.lt.s32.totalorder %s146, 1
          %s149 = scalar_select %p148, %s146, 1
          %p150 = scmp.lt.s32.totalorder %s147, 0
          %s151 = scalar_select %p150, %s147, 0
          %s152 = sadd.s32 %s151, %s149
          %s153 = smul.addr %s152, 4
          %s154 = scalar_lea.vmem %s0, %s153
          %s155 = ssub.s32 1, %s18
          %s156 = smul.u32 %s19, %s155
          %s157 = sadd.s32 %s156, %s18
          %s158 = smul.u32 %s20, %s155
        $region24: #{tpu_custom_call.1} parent=19 // pred_fallthru
          _
      $region20: #{tpu_custom_call.1} parent=5 // pred_fallthru
        _
      %p159 = scmp.le.s32.totalorder 1, %s11
      %p160 = scmp.lt.s32.totalorder %s11, 5
      %p161 = pnand %p159, %p160
      %p162 = pneg %p161
      // Predicated region
      $region25: #{tpu_custom_call.1} parent=5 // pred_check
        _
      $region26: #{tpu_custom_call.1} parent=5 // pred_check_branch
        %164 = sbr.rel (%p161) target = $region28
      $region27: #{tpu_custom_call.1} parent=5 // pred_region
        %s165 = ssub.s32 %s11, 1
        %s166 = ssub.s32 1, %s21
        %s167 = smul.u32 %s22, %s166
        %s168 = sadd.s32 %s167, %s21
        %s169 = smul.u32 %s23, %s166
        %p170 = scmp.lt.s32.totalorder %s168, 1
        %s171 = scalar_select %p170, %s168, 1
        %p172 = scmp.lt.s32.totalorder %s169, 0
        %s173 = scalar_select %p172, %s169, 0
        %s174 = sadd.s32 %s173, %s171
        %s175 = smul.addr %s174, 4
        %s176 = scalar_lea.vmem %s0, %s175
        %p177 = pneg %p66
        %p178 = pneg %p63
        %p179 = pneg %p87
        %p180 = pneg %p84
        %p181 = pneg %p119
        %p182 = pneg %p116
        %s183 = sand.u32 %s106, 1
        %s184 = scalar_lea.sflag [#allocation8], %s183
        %s185 = sand.u32 %s106, 1
        %s186 = smul.addr %s185, 8
        %s187 = scalar_lea.vmem [#allocation7], %s186
        %s188 = ssub.s32 1, %s21
        %s189 = smul.u32 %s22, %s188
        %s190 = sadd.s32 %s189, %s21
        %s191 = smul.u32 %s23, %s188
        %p192 = scmp.lt.s32.totalorder %s190, 1
        %s193 = scalar_select %p192, %s190, 1
        %p194 = scmp.lt.s32.totalorder %s191, 0
        %s195 = scalar_select %p194, %s191, 0
        %s196 = sadd.s32 %s195, %s193
        %s197 = smul.addr %s196, 4
        %s198 = scalar_lea.vmem %s0, %s197
        %s199 = ssub.s32 1, %s21
        %s200 = smul.u32 %s22, %s199
        %s201 = sadd.s32 %s200, %s21
        %s202 = smul.u32 %s23, %s199
        %s203 = smul.u32 %s22, %s21
        %s204 = smul.u32 %s23, %s21
        %p205 = scmp.eq.s32.totalorder %s21, 0
        // Predicated region
        $region29: #{tpu_custom_call.1} parent=27 // pred_check
          %p206 = pneg %p205
        $region30: #{tpu_custom_call.1} parent=27 // pred_check_branch
          %208 = sbr.rel (%p206) target = $region32
        $region31: #{tpu_custom_call.1} parent=27 // pred_region
          %p209 = scmp.eq.s32.totalorder %s22, 0
          %p210 = scmp.eq.s32.totalorder %s23, 0
          %p211 = pnand %p209, %p210
          %p212 = pneg %p211
          // Predicated region
          $region33: #{tpu_custom_call.1} parent=31 // pred_check
            _
          $region34: #{tpu_custom_call.1} parent=31 // pred_check_branch
            %214 = sbr.rel (%p211) target = $region36
          $region35: #{tpu_custom_call.1} parent=31 // pred_region
            %vm215 = vcmask 7168
            %216 = vst.msk [vmem:[#allocation2] sm:$0xff] %vm215, 0.0
            %217 = vst.msk [vmem:[#allocation3] sm:$0xff] %vm215, 0.0
          $region36: #{tpu_custom_call.1} parent=31 // pred_fallthru
            _
          %v218 = vld [vmem:[%s198] sm:$0xf]
          %s219 = sadd.s32 %s22, %s23
          %s220 = smul.u32 %s219, 4
          %s221 = scalar_lea.vmem [#allocation6], %s220
          %222 = vst [vmem:[%s221] sm:$0xf] %v218
          %v223 = vld [vmem:[%s1] sm:$0xff]
          %vm224 = vcmask 31744
          %v226 = vsel %vm224, %v223, 0
          %vm228 = vcmask 1043456
          %v230 = vsel %vm228, %v218, 0
          %232 = vmatprep.subr.mxu0 0.0
          %233 = vmatpush1.msra.mxu0 %v230
          %234 = vmatprep.subr.mxu0 0.0
          %235 = vmatpush1.msra.mxu0 0.0
          %236 = vmatprep.subr.mxu0 0.0
          %237 = vmatpush1.msra.mxu0 0.0
          %238 = vmatprep.subr.mxu0 0.0
          %239 = vmatpush1.msra.mxu0 0.0
          %240 = vmatprep.subr.mxu0 0.0
          %241 = vmatpush1.msra.mxu0 0.0
          %242 = vmatprep.subr.mxu0 0.0
          %243 = vmatpush1.msra.mxu0 0.0
          %244 = vmatprep.subr.mxu0 0.0
          %245 = vmatpush1.msra.mxu0 0.0
          %246 = vmatprep.subr.mxu0 0.0
          %247 = vmatpush1.msra.mxu0 0.0
          %248 = vmatprep.subr.mxu0 0.0
          %249 = vmatpush1.msra.mxu0 0.0
          %250 = vmatprep.subr.mxu0 0.0
          %251 = vmatpush1.msra.mxu0 0.0
          %252 = vmatprep.subr.mxu0 0.0
          %253 = vmatpush1.msra.mxu0 0.0
          %254 = vmatprep.subr.mxu0 0.0
          %255 = vmatpush1.msra.mxu0 0.0
          %256 = vmatprep.subr.mxu0 0.0
          %257 = vmatpush1.msra.mxu0 0.0
          %258 = vmatprep.subr.mxu0 0.0
          %259 = vmatpush1.msra.mxu0 0.0
          %260 = vmatprep.subr.mxu0 0.0
          %261 = vmatpush1.msra.mxu0 0.0
          %262 = vmatprep.subr.mxu0 0.0
          %263 = vmatpush1.msra.mxu0 0.0
          %264 = vmatprep.subr.mxu0 0.0
          %265 = vmatpush1.msra.mxu0 0.0
          %266 = vmatprep.subr.mxu0 0.0
          %267 = vmatpush1.msra.mxu0 0.0
          %268 = vmatprep.subr.mxu0 0.0
          %269 = vmatpush1.msra.mxu0 0.0
          %270 = vmatprep.subr.mxu0 0.0
          %271 = vmatpush1.msra.mxu0 0.0
          %272 = vmatprep.subr.mxu0 0.0
          %273 = vmatpush1.msra.mxu0 0.0
          %274 = vmatprep.subr.mxu0 0.0
          %275 = vmatpush1.msra.mxu0 0.0
          %276 = vmatprep.subr.mxu0 0.0
          %277 = vmatpush1.msra.mxu0 0.0
          %278 = vmatprep.subr.mxu0 0.0
          %279 = vmatpush1.msra.mxu0 0.0
          %280 = vmatprep.subr.mxu0 0.0
          %281 = vmatpush1.msra.mxu0 0.0
          %282 = vmatprep.subr.mxu0 0.0
          %283 = vmatpush1.msra.mxu0 0.0
          %284 = vmatprep.subr.mxu0 0.0
          %285 = vmatpush1.msra.mxu0 0.0
          %286 = vmatprep.subr.mxu0 0.0
          %287 = vmatpush1.msra.mxu0 0.0
          %288 = vmatprep.subr.mxu0 0.0
          %289 = vmatpush1.msra.mxu0 0.0
          %290 = vmatprep.subr.mxu0 0.0
          %291 = vmatpush1.msra.mxu0 0.0
          %292 = vmatprep.subr.mxu0 0.0
          %293 = vmatpush1.msra.mxu0 0.0
          %294 = vmatprep.subr.mxu0 0.0
          %295 = vmatpush1.msra.mxu0 0.0
          %296 = vmatprep.mubr.f32.mxu0 0.0
          %297 = vmatmul.mubr.f32.gmra.mrb[0].mxu0 %v226
          %v298 = vpop.f32.mrb[0].mxu0
          %v299 = vadd.f32 0.0, %v298
          %v300 = vpop.f32.mrb[0].mxu0
          %301 = vdwg.mxu0
          %v302 = vld [vmem:[#allocation2] sm:$0xff]
          %303 = vadd.xlane.f32.xlu0 %v299
          %v304 = vpop.xlane.xlu0 %303
          %v305 = vadd.f32 %v302, %v304
          %vm306 = vcmask 7168
          %307 = vst.msk [vmem:[#allocation2] sm:$0xff] %vm306, %v305
          %v308 = vld [vmem:[#allocation3] sm:$0xff]
          %v309 = vmul.f32 %v299, %v299
          %310 = vadd.xlane.f32.xlu0 %v309
          %v311 = vpop.xlane.xlu0 %310
          %v312 = vadd.f32 %v308, %v311
          %313 = vst.msk [vmem:[#allocation3] sm:$0xff] %vm306, %v312
          %p314 = scmp.eq.s32.totalorder %s22, 1
          %p315 = pnand %p314, %p210
          %p316 = pneg %p315
          // Predicated region
          $region37: #{tpu_custom_call.1} parent=31 // pred_check
            _
          $region38: #{tpu_custom_call.1} parent=31 // pred_check_branch
            %318 = sbr.rel (%p315) target = $region40
          $region39: #{tpu_custom_call.1} parent=31 // pred_region
            %v319 = vld [vmem:[#allocation2] sm:$0xff]
            %v320 = vmul.f32 %v319, 0.0078125
            %v321 = vld [vmem:[#allocation3] sm:$0xff]
            %v322 = vmul.f32 %v321, 0.0078125
            %v323 = vmul.f32 %v320, %v320
            %v324 = vsub.f32 %v322, %v323
            %v325 = vadd.f32 %v324, 1e-05
            %v326 = vrsqrt.pop %v325
            %v327 = vld [vmem:[%s1] sm:$0xff]
            %329 = vset.pattern.permute.xlu0 0
            %330 = vperm.xlu0 %329, %v326
            %v331 = vpop.permute.xlu0 %330
            %v333 = vmul.f32 %v327, %v331
            %334 = vst.msk [vmem:[#allocation4] sm:$0xff] %vm224, %v333
            %v335 = vsub.f32 0.0, %v320
            %v336 = vmul.f32 %v335, %v326
            %337 = vst.msk [vmem:[#allocation5] sm:$0xff] %vm306, %v336
          $region40: #{tpu_custom_call.1} parent=31 // pred_fallthru
            _
        $region32: #{tpu_custom_call.1} parent=27 // pred_fallthru
          _
        %p338 = scmp.eq.s32.totalorder %s21, 1
        // Predicated region
        $region41: #{tpu_custom_call.1} parent=27 // pred_check
          %p339 = pneg %p338
        $region42: #{tpu_custom_call.1} parent=27 // pred_check_branch
          %341 = sbr.rel (%p339) target = $region44
        $region43: #{tpu_custom_call.1} parent=27 // pred_region
          %s342 = sadd.s32 %s22, %s23
          %s343 = smul.u32 %s342, 4
          %s344 = scalar_lea.vmem [#allocation6], %s343
          %v345 = vld [vmem:[%s344] sm:$0xf]
          %v346 = vld [vmem:[#allocation4] sm:$0xff]
          %v347 = vld [vmem:[#allocation5] sm:$0xff]
          %349 = vset.pattern.permute.xlu0 0
          %350 = vperm.xlu0 %349, %v347
          %v351 = vpop.permute.xlu0 %350
          %vm353 = vcmask 31744
          %v355 = vsel %vm353, %v346, 0
          %vm357 = vcmask 1043456
          %v359 = vsel %vm357, %v345, 0
          %361 = vmatprep.subr.mxu0 0.0
          %362 = vmatpush1.msra.mxu0 %v359
          %363 = vmatprep.subr.mxu0 0.0
          %364 = vmatpush1.msra.mxu0 0.0
          %365 = vmatprep.subr.mxu0 0.0
          %366 = vmatpush1.msra.mxu0 0.0
          %367 = vmatprep.subr.mxu0 0.0
          %368 = vmatpush1.msra.mxu0 0.0
          %369 = vmatprep.subr.mxu0 0.0
          %370 = vmatpush1.msra.mxu0 0.0
          %371 = vmatprep.subr.mxu0 0.0
          %372 = vmatpush1.msra.mxu0 0.0
          %373 = vmatprep.subr.mxu0 0.0
          %374 = vmatpush1.msra.mxu0 0.0
          %375 = vmatprep.subr.mxu0 0.0
          %376 = vmatpush1.msra.mxu0 0.0
          %377 = vmatprep.subr.mxu0 0.0
          %378 = vmatpush1.msra.mxu0 0.0
          %379 = vmatprep.subr.mxu0 0.0
          %380 = vmatpush1.msra.mxu0 0.0
          %381 = vmatprep.subr.mxu0 0.0
          %382 = vmatpush1.msra.mxu0 0.0
          %383 = vmatprep.subr.mxu0 0.0
          %384 = vmatpush1.msra.mxu0 0.0
          %385 = vmatprep.subr.mxu0 0.0
          %386 = vmatpush1.msra.mxu0 0.0
          %387 = vmatprep.subr.mxu0 0.0
          %388 = vmatpush1.msra.mxu0 0.0
          %389 = vmatprep.subr.mxu0 0.0
          %390 = vmatpush1.msra.mxu0 0.0
          %391 = vmatprep.subr.mxu0 0.0
          %392 = vmatpush1.msra.mxu0 0.0
          %393 = vmatprep.subr.mxu0 0.0
          %394 = vmatpush1.msra.mxu0 0.0
          %395 = vmatprep.subr.mxu0 0.0
          %396 = vmatpush1.msra.mxu0 0.0
          %397 = vmatprep.subr.mxu0 0.0
          %398 = vmatpush1.msra.mxu0 0.0
          %399 = vmatprep.subr.mxu0 0.0
          %400 = vmatpush1.msra.mxu0 0.0
          %401 = vmatprep.subr.mxu0 0.0
          %402 = vmatpush1.msra.mxu0 0.0
          %403 = vmatprep.subr.mxu0 0.0
          %404 = vmatpush1.msra.mxu0 0.0
          %405 = vmatprep.subr.mxu0 0.0
          %406 = vmatpush1.msra.mxu0 0.0
          %407 = vmatprep.subr.mxu0 0.0
          %408 = vmatpush1.msra.mxu0 0.0
          %409 = vmatprep.subr.mxu0 0.0
          %410 = vmatpush1.msra.mxu0 0.0
          %411 = vmatprep.subr.mxu0 0.0
          %412 = vmatpush1.msra.mxu0 0.0
          %413 = vmatprep.subr.mxu0 0.0
          %414 = vmatpush1.msra.mxu0 0.0
          %415 = vmatprep.subr.mxu0 0.0
          %416 = vmatpush1.msra.mxu0 0.0
          %417 = vmatprep.subr.mxu0 0.0
          %418 = vmatpush1.msra.mxu0 0.0
          %419 = vmatprep.subr.mxu0 0.0
          %420 = vmatpush1.msra.mxu0 0.0
          %421 = vmatprep.subr.mxu0 0.0
          %422 = vmatpush1.msra.mxu0 0.0
          %423 = vmatprep.subr.mxu0 0.0
          %424 = vmatpush1.msra.mxu0 0.0
          %425 = vmatprep.mubr.f32.mxu0 0.0
          %426 = vmatmul.mubr.f32.gmra.mrb[0].mxu0 %v355
          %v427 = vpop.f32.mrb[0].mxu0
          %v428 = vadd.f32 %v351, %v427
          %v429 = vpop.f32.mrb[0].mxu0
          %430 = vdwg.mxu0
          %431 = vst [vmem:[%s187] sm:$0xff] %v428
        $region44: #{tpu_custom_call.1} parent=27 // pred_fallthru
          _
        %s432 = sand.u32 %s106, 1
        %s433 = scalar_lea.sflag [#allocation8], %s432
        %s434 = sand.u32 %s106, 1
        %s435 = smul.addr %s434, 8
        %s436 = scalar_lea.vmem [#allocation7], %s435
        // Predicated region
        $region45: #{tpu_custom_call.1} parent=27 // pred_check
          %p437 = pneg %p116
        $region46: #{tpu_custom_call.1} parent=27 // pred_check_branch
          %439 = sbr.rel (%p437) target = $region48
        $region47: #{tpu_custom_call.1} parent=27 // pred_region
          %s440 = smul.u32 %s22, %s21
          %s441 = smul.u32 %s23, %s21
          %s443 = ssub.s32 128, 128
          %444 = vsyncadd %s433, %s443
          %s445 = sadd.s32 %s441, %s440
          %s446 = smul.addr %s445, 128
          %s447 = scalar_lea.hbm %s2, %s446
          %s449 = sshll.u32 %s436, 4
          %s450 = int_to_ptr.vmem [resolvable:$true] %s449
          %452 = dma.vmem_to_hbm [thread:$0]  %s450, 128, %s447, %s433
        $region48: #{tpu_custom_call.1} parent=27 // pred_fallthru
          _
      $region28: #{tpu_custom_call.1} parent=5 // pred_fallthru
        _
      %p453 = scmp.le.s32.totalorder 2, %s11
      // Predicated region
      $region49: #{tpu_custom_call.1} parent=5 // pred_check
        %p454 = pneg %p453
      $region50: #{tpu_custom_call.1} parent=5 // pred_check_branch
        %456 = sbr.rel (%p454) target = $region52
      $region51: #{tpu_custom_call.1} parent=5 // pred_region
        %s457 = ssub.s32 %s11, 2
        // Predicated region
        $region53: #{tpu_custom_call.1} parent=51 // pred_check
          %p458 = pneg %p122
        $region54: #{tpu_custom_call.1} parent=51 // pred_check_branch
          %460 = sbr.rel (%p458) target = $region56
        $region55: #{tpu_custom_call.1} parent=51 // pred_region
          %s461 = sand.u32 %s107, 1
          %s462 = scalar_lea.sflag [#allocation8], %s461
          %s463 = sand.u32 %s107, 1
          %s464 = smul.addr %s463, 8
          %s465 = scalar_lea.vmem [#allocation7], %s464
          %466 = dma.done %s462, 128
        $region56: #{tpu_custom_call.1} parent=51 // pred_fallthru
          _
      $region52: #{tpu_custom_call.1} parent=5 // pred_fallthru
        _
    $region6: #{tpu_custom_call.1} parent=1 // loop_footer
      %s15 = sadd.s32 1, %s11
    $region7: #{tpu_custom_call.1} parent=1 // loop_footer_branch
      %10 = sbr.rel target = $region3
    $region8: #{tpu_custom_call.1} parent=1 // loop_exit
      _
    %467 = vsyncpa [#allocation8], 1
    %s468 = scalar_lea.sflag [#allocation8], 1
    %469 = vsyncpa %s468, 1

</llo_original>
